<compile_context>
chip_gen: v7x
topology: tpu7x:2x2x1
jax: 0.10.0
libtpu: 0.0.40
codegen_flags: <defaults>
</compile_context>

<pallas_src>
import jax
import jax.numpy as jnp
from jax import lax
from jax.experimental import pallas as pl
from jax.experimental.pallas import tpu as pltpu

_EPS = 1e-12  # torch.nn.functional.normalize default eps

# ---- model dims / output-slab layout (feature axis of the 128-wide slab) ------------
IN_FEATURES = 16
EMB_DIM = 32
HID_DIM = 32
LOGITS_DIM = 8
VALUE_DIM = 4
NUM_EMB = 10
SLAB = 128  # lane-dense output width

_OFF_EMB = 0
_OFF_HID = _OFF_EMB + EMB_DIM            # 32
_OFF_LOGITS = _OFF_HID + HID_DIM         # 64
_OFF_VALUE = _OFF_LOGITS + LOGITS_DIM    # 72
_OFF_TGT = _OFF_VALUE + VALUE_DIM        # 76
_USED = _OFF_TGT + EMB_DIM               # 108  (<= 128)

TARGET_TILE_B = 2048  # amortizes the ~0.35us per-grid-step overhead; fits all VMEM budgets


def _round_up(x, m):
    return ((x + m - 1) // m) * m


def _l2norm_rows(y):
    """Row-wise L2 normalize: y * rsqrt(max(sum(y^2), eps^2)) == y / max(||y||, eps)."""
    ss = jnp.sum(y * y, axis=1, keepdims=True)
    return y * lax.rsqrt(jnp.maximum(ss, _EPS * _EPS))


# --------------------------------------------------------------------------------------
# Fused Pallas kernel: whole Hydra forward for one batch tile.
# --------------------------------------------------------------------------------------
def _hydra_fused_kernel(features_ref, ids_ref,
                        enc_w_ref, enc_b_ref,
                        hid_w_ref, hid_b_ref,
                        head_w_ref, head_b_ref,
                        emb_tbl_ref, out_ref):
    tb = features_ref.shape[0]
    num_emb = emb_tbl_ref.shape[0]  # padded to a sublane multiple of 8

    x = features_ref[...]  # (tb, 16) f32

    # encoder: Linear + ReLU, then Normalize
    emb = jnp.dot(x, enc_w_ref[...], preferred_element_type=jnp.float32) + enc_b_ref[...]
    emb = _l2norm_rows(jnp.maximum(emb, 0.0))                                   # (tb, 32)

    # heads["_hidden"]: Linear + ReLU
    hid = jnp.dot(emb, hid_w_ref[...], preferred_element_type=jnp.float32) + hid_b_ref[...]
    hid = jnp.maximum(hid, 0.0)                                                 # (tb, 32)

    # merged leaf-head matmul: [logits_w | value_w] -> (tb, 12), then split
    heads = jnp.dot(hid, head_w_ref[...], preferred_element_type=jnp.float32) + head_b_ref[...]
    heads = jnp.maximum(heads, 0.0)
    logits = heads[:, :LOGITS_DIM]                                              # (tb, 8)
    value = _l2norm_rows(heads[:, LOGITS_DIM:LOGITS_DIM + VALUE_DIM])           # (tb, 4)

    # embedders["target"]: embedding gather as one-hot matmul + Normalize
    # TODO(synk): one-hot gather returns zeros for out-of-range ids, whereas
    # torch.nn.Embedding raises; identical for valid ids.
    ids = ids_ref[...]                                                          # (tb, 1) int32
    row_iota = lax.broadcasted_iota(jnp.int32, (tb, num_emb), 1)
    onehot = (row_iota == ids).astype(jnp.float32)                              # (tb, 16)
    tgt = jnp.dot(onehot, emb_tbl_ref[...], preferred_element_type=jnp.float32)
    tgt = _l2norm_rows(tgt)                                                     # (tb, 32)

    # Direct sub-slice stores into the lane-dense 128-wide output block
    # (no concat temp, no XLU lane shuffles; the block DMA stays unmasked).
    out_ref[:, _OFF_EMB:_OFF_EMB + EMB_DIM] = emb.astype(out_ref.dtype)
    out_ref[:, _OFF_HID:_OFF_HID + HID_DIM] = hid.astype(out_ref.dtype)
    out_ref[:, _OFF_LOGITS:_OFF_LOGITS + LOGITS_DIM] = logits.astype(out_ref.dtype)
    out_ref[:, _OFF_VALUE:_OFF_VALUE + VALUE_DIM] = value.astype(out_ref.dtype)
    out_ref[:, _OFF_TGT:_OFF_TGT + EMB_DIM] = tgt.astype(out_ref.dtype)
    out_ref[:, _USED:] = jnp.zeros((tb, SLAB - _USED), out_ref.dtype)


# --------------------------------------------------------------------------------------
# One-time parameter preparation (hoisted out of the per-call forward).
# --------------------------------------------------------------------------------------
def prepare_hydra_params(params):
    prepared = dict(params)
    prepared["head_w"] = jnp.concatenate([params["logits_w"], params["value_w"]], axis=1)
    prepared["head_b"] = jnp.concatenate([params["logits_b"], params["value_b"]], axis=1)
    tbl = params["emb_table"]
    pad_rows = _round_up(tbl.shape[0], 8) - tbl.shape[0]
    prepared["emb_table_padded"] = jnp.pad(tbl, ((0, pad_rows), (0, 0)))
    return prepared


# --------------------------------------------------------------------------------------
# Wrapper: pad batch to a multiple of 8, run fused kernel, slice the slab apart.
# --------------------------------------------------------------------------------------
def hydra_forward(prepared, features, target, *, out_dtype=jnp.float32):
    B, in_features = features.shape
    b_pad = _round_up(B, 8)  # f32 sublane tile only; ragged last grid block is allowed

    # Tile selection: big tiles amortize the ~0.35us per-grid-step overhead, but keep
    # >=2 "parallel" grid steps whenever possible so both v7x TensorCores get work.
    tile_b = min(TARGET_TILE_B, b_pad)
    if b_pad >= 16:
        tile_b = min(tile_b, _round_up(pl.cdiv(b_pad, 2), 8))
    grid = (pl.cdiv(b_pad, tile_b),)

    feats_p = features.astype(jnp.float32)
    ids_p = target.astype(jnp.int32).reshape(-1, 1)
    if b_pad != B:
        feats_p = jnp.pad(feats_p, ((0, b_pad - B), (0, 0)))
        ids_p = jnp.pad(ids_p, ((0, b_pad - B), (0, 0)))

    weight_arrays = (prepared["enc_w"], prepared["enc_b"],
                     prepared["hid_w"], prepared["hid_b"],
                     prepared["head_w"], prepared["head_b"],
                     prepared["emb_table_padded"])
    param_bytes = sum(int(a.size) * a.dtype.itemsize for a in weight_arrays)
    out_itemsize = jnp.dtype(out_dtype).itemsize

    num_emb_pad = prepared["emb_table_padded"].shape[0]

    # Explicit VMEM budget: 2x output buffers + 2x input buffers + weights + generous
    # headroom for in-kernel intermediates / spills. Stays well under the 16/32 MiB
    # scoped defaults (v5e / v6e+v7x) yet is explicit so growing tile_b stays safe.
    vmem_budget = (2 * tile_b * SLAB * out_itemsize
                   + 2 * tile_b * (in_features + 1) * 4
                   + 2 * param_bytes
                   + 12 * tile_b * SLAB * 4
                   + (4 << 20))
    vmem_budget = int(min(vmem_budget, 48 << 20))

    # Advisory cost estimate: tiny compute, DMA-heavy.
    flops = 2 * b_pad * (in_features * EMB_DIM + EMB_DIM * HID_DIM
                         + HID_DIM * (LOGITS_DIM + VALUE_DIM) + num_emb_pad * EMB_DIM)
    bytes_accessed = b_pad * (in_features * 4 + 4) + b_pad * SLAB * out_itemsize + param_bytes
    transcendentals = 3 * b_pad  # three row-wise rsqrt

    slab = pl.pallas_call(
        _hydra_fused_kernel,
        out_shape=jax.ShapeDtypeStruct((b_pad, SLAB), out_dtype),
        grid=grid,
        in_specs=[
            pl.BlockSpec((tile_b, in_features), lambda i: (i, 0)),   # features
            pl.BlockSpec((tile_b, 1), lambda i: (i, 0)),             # target ids
            pl.BlockSpec(prepared["enc_w"].shape, lambda i: (0, 0)),
            pl.BlockSpec(prepared["enc_b"].shape, lambda i: (0, 0)),
            pl.BlockSpec(prepared["hid_w"].shape, lambda i: (0, 0)),
            pl.BlockSpec(prepared["hid_b"].shape, lambda i: (0, 0)),
            pl.BlockSpec(prepared["head_w"].shape, lambda i: (0, 0)),
            pl.BlockSpec(prepared["head_b"].shape, lambda i: (0, 0)),
            pl.BlockSpec(prepared["emb_table_padded"].shape, lambda i: (0, 0)),
        ],
        out_specs=pl.BlockSpec((tile_b, SLAB), lambda i: (i, 0)),
        compiler_params=pltpu.CompilerParams(
            dimension_semantics=("parallel",),   # shards batch tiles across TCs on v7x
            vmem_limit_bytes=vmem_budget,
        ),
        cost_estimate=pl.CostEstimate(
            flops=flops, transcendentals=transcendentals, bytes_accessed=bytes_accessed),
    )(feats_p, ids_p,
      prepared["enc_w"], prepared["enc_b"],
      prepared["hid_w"], prepared["hid_b"],
      prepared["head_w"], prepared["head_b"],
      prepared["emb_table_padded"])

    embeddings = slab[:B, _OFF_EMB:_OFF_EMB + EMB_DIM]
    hidden = slab[:B, _OFF_HID:_OFF_HID + HID_DIM]
    logits = slab[:B, _OFF_LOGITS:_OFF_LOGITS + LOGITS_DIM]
    value = slab[:B, _OFF_VALUE:_OFF_VALUE + VALUE_DIM]
    target_embeddings = slab[:B, _OFF_TGT:_OFF_TGT + EMB_DIM]

    # flatten_dict(heads_output) with '/' separator => keys: '', 'logits', '_branch/value'
    return {
        "features": features,
        "embeddings": embeddings,
        "": hidden,
        "logits": logits,
        "_branch/value": value,
        "target_embeddings": target_embeddings,
    }


# --------------------------------------------------------------------------------------
# Parameter construction (deterministic, synthetic)
# --------------------------------------------------------------------------------------
def init_hydra_params(key, in_features=IN_FEATURES, emb_dim=EMB_DIM, hidden_dim=HID_DIM,
                      logits_dim=LOGITS_DIM, value_dim=VALUE_DIM, num_embeddings=NUM_EMB):
    ks = jax.random.split(key, 5)

    def lin(k, fan_in, fan_out):
        kw, kb = jax.random.split(k)
        bound = 1.0 / jnp.sqrt(fan_in)
        w = jax.random.uniform(kw, (fan_in, fan_out), jnp.float32, -bound, bound)
        b = jax.random.uniform(kb, (1, fan_out), jnp.float32, -bound, bound)
        return w, b

    params = {}
    params["enc_w"], params["enc_b"] = lin(ks[0], in_features, emb_dim)
    params["hid_w"], params["hid_b"] = lin(ks[1], emb_dim, hidden_dim)
    params["logits_w"], params["logits_b"] = lin(ks[2], hidden_dim, logits_dim)
    params["value_w"], params["value_b"] = lin(ks[3], hidden_dim, value_dim)
    params["emb_table"] = jax.random.normal(ks[4], (num_embeddings, emb_dim), jnp.float32)
    return params


# --------------------------------------------------------------------------------------
# Plain-JAX reference (for correctness check)
# --------------------------------------------------------------------------------------
def _ref_forward(params, features, target):
    def l2n(x):
        n = jnp.sqrt(jnp.sum(x * x, axis=1, keepdims=True))
        return x / jnp.maximum(n, _EPS)

    emb = l2n(jnp.maximum(features @ params["enc_w"] + params["enc_b"], 0.0))
    hid = jnp.maximum(emb @ params["hid_w"] + params["hid_b"], 0.0)
    logits = jnp.maximum(hid @ params["logits_w"] + params["logits_b"], 0.0)
    value = l2n(jnp.maximum(hid @ params["value_w"] + params["value_b"], 0.0))
    tgt = l2n(jnp.take(params["emb_table"], target, axis=0))
    return {"features": features, "embeddings": emb, "": hid,
            "logits": logits, "_branch/value": value, "target_embeddings": tgt}


# --------------------------------------------------------------------------------------
# Main
# --------------------------------------------------------------------------------------
if __name__ == "__main__":
    key = jax.random.PRNGKey(0)
    k_params, k_f1, k_t1, k_f2, k_t2 = jax.random.split(key, 5)

    params = init_hydra_params(k_params, in_features=IN_FEATURES)
    prepared = prepare_hydra_params(params)

    fwd = jax.jit(hydra_forward)

    # (small batch) and (ragged batch -> 2 grid steps, non-divisible last block)
    for B, kf, kt in [(4, k_f1, k_t1), (37, k_f2, k_t2)]:
        features = jax.random.normal(kf, (B, IN_FEATURES), jnp.float32)
        target = jax.random.randint(kt, (B,), 0, NUM_EMB, jnp.int32)

        out = jax.block_until_ready(fwd(prepared, features, target))

        # shape checks
        assert out["features"].shape == (B, IN_FEATURES)
        assert out["embeddings"].shape == (B, EMB_DIM)
        assert out[""].shape == (B, HID_DIM)
        assert out["logits"].shape == (B, LOGITS_DIM)
        assert out["_branch/value"].shape == (B, VALUE_DIM)
        assert out["target_embeddings"].shape == (B, EMB_DIM)

        # numerical check against plain-JAX reference
        ref = _ref_forward(params, features, target)
        for k in ref:
            assert jnp.allclose(out[k], ref[k], atol=1e-4, rtol=1e-4), f"mismatch '{k}' (B={B})"

    print("KERNEL_OK")
</pallas_src>

<mosaic_0001>
module attributes {stable_mosaic.version = 11 : i64} {
  func.func @_hydra_fused_kernel(%arg0: i32, %arg1: memref<8x16xf32, #tpu.memory_space<vmem>>, %arg2: memref<8x1xi32, #tpu.memory_space<vmem>>, %arg3: memref<16x32xf32, #tpu.memory_space<vmem>>, %arg4: memref<1x32xf32, #tpu.memory_space<vmem>>, %arg5: memref<32x32xf32, #tpu.memory_space<vmem>>, %arg6: memref<1x32xf32, #tpu.memory_space<vmem>>, %arg7: memref<32x12xf32, #tpu.memory_space<vmem>>, %arg8: memref<1x12xf32, #tpu.memory_space<vmem>>, %arg9: memref<16x32xf32, #tpu.memory_space<vmem>>, %arg10: memref<8x128xf32, #tpu.memory_space<vmem>>) attributes {dimension_semantics = [#tpu.dimension_semantics<parallel>], iteration_bounds = array<i64: 1>, scalar_prefetch = 0 : i64, scratch_operands = 0 : i64, tpu.core_type = #tpu.core_type<tc>, window_params = [{transform_indices = @transform_0, window_bounds = array<i64: 8, 16>}, {transform_indices = @transform_1, window_bounds = array<i64: 8, 1>}, {pipeline_mode = #tpu.pipeline_mode<synchronous>, transform_indices = @transform_2, window_bounds = array<i64: 16, 32>}, {pipeline_mode = #tpu.pipeline_mode<synchronous>, transform_indices = @transform_3, window_bounds = array<i64: 1, 32>}, {pipeline_mode = #tpu.pipeline_mode<synchronous>, transform_indices = @transform_4, window_bounds = array<i64: 32, 32>}, {pipeline_mode = #tpu.pipeline_mode<synchronous>, transform_indices = @transform_5, window_bounds = array<i64: 1, 32>}, {pipeline_mode = #tpu.pipeline_mode<synchronous>, transform_indices = @transform_6, window_bounds = array<i64: 32, 12>}, {pipeline_mode = #tpu.pipeline_mode<synchronous>, transform_indices = @transform_7, window_bounds = array<i64: 1, 12>}, {pipeline_mode = #tpu.pipeline_mode<synchronous>, transform_indices = @transform_8, window_bounds = array<i64: 16, 32>}, {transform_indices = @transform_9, window_bounds = array<i64: 8, 128>}]} {
    %c0 = arith.constant 0 : index
    %c0_0 = arith.constant 0 : index
    %0 = vector.load %arg1[%c0, %c0_0] : memref<8x16xf32, #tpu.memory_space<vmem>>, vector<8x16xf32>
    %c0_1 = arith.constant 0 : index
    %c0_2 = arith.constant 0 : index
    %1 = vector.load %arg3[%c0_1, %c0_2] : memref<16x32xf32, #tpu.memory_space<vmem>>, vector<16x32xf32>
    %cst = arith.constant dense<0.000000e+00> : vector<8x32xf32>
    %2 = tpu.matmul %0, %1, %cst {dimension_numbers = #tpu.dot_dimension_numbers<[1], [0], [0], [1], [0, 0, 1, 1], [], []>} : vector<8x16xf32>, vector<16x32xf32>, vector<8x32xf32> -> vector<8x32xf32>
    %c0_3 = arith.constant 0 : index
    %c0_4 = arith.constant 0 : index
    %3 = vector.load %arg4[%c0_3, %c0_4] : memref<1x32xf32, #tpu.memory_space<vmem>>, vector<1x32xf32>
    %4 = vector.broadcast %3 : vector<1x32xf32> to vector<8x32xf32>
    %5 = arith.addf %2, %4 : vector<8x32xf32>
    %cst_5 = arith.constant 0.000000e+00 : f32
    %6 = vector.broadcast %cst_5 : f32 to vector<8x32xf32>
    %7 = arith.maximumf %5, %6 : vector<8x32xf32>
    %8 = arith.mulf %7, %7 : vector<8x32xf32>
    %cst_6 = arith.constant dense<0.000000e+00> : vector<8xf32>
    %9 = vector.multi_reduction <add>, %8, %cst_6 [1] : vector<8x32xf32> to vector<8xf32>
    %10 = vector.shape_cast %9 : vector<8xf32> to vector<8x1xf32>
    %cst_7 = arith.constant 1.000000e-24 : f32
    %11 = vector.broadcast %cst_7 : f32 to vector<8x1xf32>
    %12 = arith.maximumf %10, %11 : vector<8x1xf32>
    %13 = math.rsqrt %12 : vector<8x1xf32>
    %14 = vector.broadcast %13 : vector<8x1xf32> to vector<8x32xf32>
    %15 = arith.mulf %7, %14 : vector<8x32xf32>
    %c0_8 = arith.constant 0 : index
    %c0_9 = arith.constant 0 : index
    %16 = vector.load %arg5[%c0_8, %c0_9] : memref<32x32xf32, #tpu.memory_space<vmem>>, vector<32x32xf32>
    %cst_10 = arith.constant dense<0.000000e+00> : vector<8x32xf32>
    %17 = tpu.matmul %15, %16, %cst_10 {dimension_numbers = #tpu.dot_dimension_numbers<[1], [0], [0], [1], [0, 0, 1, 1], [], []>} : vector<8x32xf32>, vector<32x32xf32>, vector<8x32xf32> -> vector<8x32xf32>
    %c0_11 = arith.constant 0 : index
    %c0_12 = arith.constant 0 : index
    %18 = vector.load %arg6[%c0_11, %c0_12] : memref<1x32xf32, #tpu.memory_space<vmem>>, vector<1x32xf32>
    %19 = vector.broadcast %18 : vector<1x32xf32> to vector<8x32xf32>
    %20 = arith.addf %17, %19 : vector<8x32xf32>
    %cst_13 = arith.constant 0.000000e+00 : f32
    %21 = vector.broadcast %cst_13 : f32 to vector<8x32xf32>
    %22 = arith.maximumf %20, %21 : vector<8x32xf32>
    %c0_14 = arith.constant 0 : index
    %c0_15 = arith.constant 0 : index
    %23 = vector.load %arg7[%c0_14, %c0_15] : memref<32x12xf32, #tpu.memory_space<vmem>>, vector<32x12xf32>
    %cst_16 = arith.constant dense<0.000000e+00> : vector<8x12xf32>
    %24 = tpu.matmul %22, %23, %cst_16 {dimension_numbers = #tpu.dot_dimension_numbers<[1], [0], [0], [1], [0, 0, 1, 1], [], []>} : vector<8x32xf32>, vector<32x12xf32>, vector<8x12xf32> -> vector<8x12xf32>
    %c0_17 = arith.constant 0 : index
    %c0_18 = arith.constant 0 : index
    %25 = vector.load %arg8[%c0_17, %c0_18] : memref<1x12xf32, #tpu.memory_space<vmem>>, vector<1x12xf32>
    %26 = vector.broadcast %25 : vector<1x12xf32> to vector<8x12xf32>
    %27 = arith.addf %24, %26 : vector<8x12xf32>
    %cst_19 = arith.constant 0.000000e+00 : f32
    %28 = vector.broadcast %cst_19 : f32 to vector<8x12xf32>
    %29 = arith.maximumf %27, %28 : vector<8x12xf32>
    %30 = vector.extract_strided_slice %29 {offsets = [0, 0], sizes = [8, 8], strides = [1, 1]} : vector<8x12xf32> to vector<8x8xf32>
    %31 = vector.extract_strided_slice %29 {offsets = [0, 8], sizes = [8, 4], strides = [1, 1]} : vector<8x12xf32> to vector<8x4xf32>
    %32 = arith.mulf %31, %31 : vector<8x4xf32>
    %cst_20 = arith.constant dense<0.000000e+00> : vector<8xf32>
    %33 = vector.multi_reduction <add>, %32, %cst_20 [1] : vector<8x4xf32> to vector<8xf32>
    %34 = vector.shape_cast %33 : vector<8xf32> to vector<8x1xf32>
    %cst_21 = arith.constant 1.000000e-24 : f32
    %35 = vector.broadcast %cst_21 : f32 to vector<8x1xf32>
    %36 = arith.maximumf %34, %35 : vector<8x1xf32>
    %37 = math.rsqrt %36 : vector<8x1xf32>
    %38 = vector.broadcast %37 : vector<8x1xf32> to vector<8x4xf32>
    %39 = arith.mulf %31, %38 : vector<8x4xf32>
    %c0_22 = arith.constant 0 : index
    %c0_23 = arith.constant 0 : index
    %40 = vector.load %arg2[%c0_22, %c0_23] : memref<8x1xi32, #tpu.memory_space<vmem>>, vector<8x1xi32>
    %41 = tpu.iota {dimensions = array<i32: 1>} : vector<8x16xi32>
    %42 = vector.broadcast %40 : vector<8x1xi32> to vector<8x16xi32>
    %43 = arith.cmpi eq, %41, %42 : vector<8x16xi32>
    %44 = arith.extui %43 : vector<8x16xi1> to vector<8x16xi32>
    %45 = arith.sitofp %44 : vector<8x16xi32> to vector<8x16xf32>
    %c0_24 = arith.constant 0 : index
    %c0_25 = arith.constant 0 : index
    %46 = vector.load %arg9[%c0_24, %c0_25] : memref<16x32xf32, #tpu.memory_space<vmem>>, vector<16x32xf32>
    %cst_26 = arith.constant dense<0.000000e+00> : vector<8x32xf32>
    %47 = tpu.matmul %45, %46, %cst_26 {dimension_numbers = #tpu.dot_dimension_numbers<[1], [0], [0], [1], [0, 0, 1, 1], [], []>} : vector<8x16xf32>, vector<16x32xf32>, vector<8x32xf32> -> vector<8x32xf32>
    %48 = arith.mulf %47, %47 : vector<8x32xf32>
    %cst_27 = arith.constant dense<0.000000e+00> : vector<8xf32>
    %49 = vector.multi_reduction <add>, %48, %cst_27 [1] : vector<8x32xf32> to vector<8xf32>
    %50 = vector.shape_cast %49 : vector<8xf32> to vector<8x1xf32>
    %cst_28 = arith.constant 1.000000e-24 : f32
    %51 = vector.broadcast %cst_28 : f32 to vector<8x1xf32>
    %52 = arith.maximumf %50, %51 : vector<8x1xf32>
    %53 = math.rsqrt %52 : vector<8x1xf32>
    %54 = vector.broadcast %53 : vector<8x1xf32> to vector<8x32xf32>
    %55 = arith.mulf %47, %54 : vector<8x32xf32>
    %c0_29 = arith.constant 0 : index
    %c0_30 = arith.constant 0 : index
    %56 = vector.load %arg10[%c0_29, %c0_30] : memref<8x128xf32, #tpu.memory_space<vmem>>, vector<8x32xf32>
    tpu.vector_store %arg10[%c0_29, %c0_30], %15 {strides = array<i32>} : memref<8x128xf32, #tpu.memory_space<vmem>>, vector<8x32xf32>,
    %c0_31 = arith.constant 0 : index
    %c32 = arith.constant 32 : index
    %57 = vector.load %arg10[%c0_31, %c32] : memref<8x128xf32, #tpu.memory_space<vmem>>, vector<8x32xf32>
    tpu.vector_store %arg10[%c0_31, %c32], %22 {strides = array<i32>} : memref<8x128xf32, #tpu.memory_space<vmem>>, vector<8x32xf32>,
    %c0_32 = arith.constant 0 : index
    %c64 = arith.constant 64 : index
    %58 = vector.load %arg10[%c0_32, %c64] : memref<8x128xf32, #tpu.memory_space<vmem>>, vector<8x8xf32>
    tpu.vector_store %arg10[%c0_32, %c64], %30 {strides = array<i32>} : memref<8x128xf32, #tpu.memory_space<vmem>>, vector<8x8xf32>,
    %c0_33 = arith.constant 0 : index
    %c72 = arith.constant 72 : index
    %59 = vector.load %arg10[%c0_33, %c72] : memref<8x128xf32, #tpu.memory_space<vmem>>, vector<8x4xf32>
    tpu.vector_store %arg10[%c0_33, %c72], %39 {strides = array<i32>} : memref<8x128xf32, #tpu.memory_space<vmem>>, vector<8x4xf32>,
    %c0_34 = arith.constant 0 : index
    %c76 = arith.constant 76 : index
    %60 = vector.load %arg10[%c0_34, %c76] : memref<8x128xf32, #tpu.memory_space<vmem>>, vector<8x32xf32>
    tpu.vector_store %arg10[%c0_34, %c76], %55 {strides = array<i32>} : memref<8x128xf32, #tpu.memory_space<vmem>>, vector<8x32xf32>,
    %cst_35 = arith.constant 0.000000e+00 : f32
    %61 = vector.broadcast %cst_35 : f32 to vector<8x20xf32>
    %c0_36 = arith.constant 0 : index
    %c108 = arith.constant 108 : index
    %62 = vector.load %arg10[%c0_36, %c108] : memref<8x128xf32, #tpu.memory_space<vmem>>, vector<8x20xf32>
    tpu.vector_store %arg10[%c0_36, %c108], %61 {strides = array<i32>} : memref<8x128xf32, #tpu.memory_space<vmem>>, vector<8x20xf32>,
    return
  }
  func.func @transform_0(%arg0: i32) -> (i32, i32) {
    %c0_i32 = arith.constant 0 : i32
    %c0_i32_0 = arith.constant 0 : i32
    return %arg0, %c0_i32 : i32, i32
  }
  func.func @transform_1(%arg0: i32) -> (i32, i32) {
    %c0_i32 = arith.constant 0 : i32
    %c0_i32_0 = arith.constant 0 : i32
    return %arg0, %c0_i32 : i32, i32
  }
  func.func @transform_2(%arg0: i32) -> (i32, i32) {
    %c0_i32 = arith.constant 0 : i32
    %c0_i32_0 = arith.constant 0 : i32
    %c0_i32_1 = arith.constant 0 : i32
    return %c0_i32, %c0_i32_0 : i32, i32
  }
  func.func @transform_3(%arg0: i32) -> (i32, i32) {
    %c0_i32 = arith.constant 0 : i32
    %c0_i32_0 = arith.constant 0 : i32
    %c0_i32_1 = arith.constant 0 : i32
    return %c0_i32, %c0_i32_0 : i32, i32
  }
  func.func @transform_4(%arg0: i32) -> (i32, i32) {
    %c0_i32 = arith.constant 0 : i32
    %c0_i32_0 = arith.constant 0 : i32
    %c0_i32_1 = arith.constant 0 : i32
    return %c0_i32, %c0_i32_0 : i32, i32
  }
  func.func @transform_5(%arg0: i32) -> (i32, i32) {
    %c0_i32 = arith.constant 0 : i32
    %c0_i32_0 = arith.constant 0 : i32
    %c0_i32_1 = arith.constant 0 : i32
    return %c0_i32, %c0_i32_0 : i32, i32
  }
  func.func @transform_6(%arg0: i32) -> (i32, i32) {
    %c0_i32 = arith.constant 0 : i32
    %c0_i32_0 = arith.constant 0 : i32
    %c0_i32_1 = arith.constant 0 : i32
    return %c0_i32, %c0_i32_0 : i32, i32
  }
  func.func @transform_7(%arg0: i32) -> (i32, i32) {
    %c0_i32 = arith.constant 0 : i32
    %c0_i32_0 = arith.constant 0 : i32
    %c0_i32_1 = arith.constant 0 : i32
    return %c0_i32, %c0_i32_0 : i32, i32
  }
  func.func @transform_8(%arg0: i32) -> (i32, i32) {
    %c0_i32 = arith.constant 0 : i32
    %c0_i32_0 = arith.constant 0 : i32
    %c0_i32_1 = arith.constant 0 : i32
    return %c0_i32, %c0_i32_0 : i32, i32
  }
  func.func @transform_9(%arg0: i32) -> (i32, i32) {
    %c0_i32 = arith.constant 0 : i32
    %c0_i32_0 = arith.constant 0 : i32
    return %arg0, %c0_i32 : i32, i32
  }
}

</mosaic_0001>

<llo_original>
// kernel: hydra_forward.1
$region0: #{hydra_forward.1}
  #allocation0 [shape = 'u32[]', space=smem, size = 0x4, offset = 0x4, fixed_abs, tag = 'smem constant byte address 0x4 - core index']
  #allocation1 [shape = 'u32[144,128]{1,0:T(1,128)}', space=vmem, size = 0x12000, scoped, tag = 'internal scratch']
  %s0 = inlined_call_operand.vmem [shape: f32[8,16], index: 0, kind: input, shape index: {}]
  %s1 = inlined_call_operand.vmem [shape: s32[8,1], index: 1, kind: input, shape index: {}]
  %s2 = inlined_call_operand.vmem [shape: f32[16,32], index: 2, kind: input, shape index: {}]
  %s3 = inlined_call_operand.vmem [shape: f32[1,32], index: 3, kind: input, shape index: {}]
  %s4 = inlined_call_operand.vmem [shape: f32[32,32], index: 4, kind: input, shape index: {}]
  %s5 = inlined_call_operand.vmem [shape: f32[1,32], index: 5, kind: input, shape index: {}]
  %s6 = inlined_call_operand.vmem [shape: f32[32,12], index: 6, kind: input, shape index: {}]
  %s7 = inlined_call_operand.vmem [shape: f32[1,12], index: 7, kind: input, shape index: {}]
  %s8 = inlined_call_operand.vmem [shape: f32[16,32], index: 8, kind: input, shape index: {}]
  %s9 = inlined_call_operand.vmem [shape: f32[8,128], index: 9, kind: output, shape index: {}]
  %s10 = sld [smem:[#allocation0]]
  $region46: #{hydra_forward.1} parent=0
    _
  %s12 = ssub.s32 1, %s10
  %s13 = scalar_select 0, %s12, %s10
  // Predicated region
  $region2: #{hydra_forward.1} parent=0 // pred_check
    _
  $region3: #{hydra_forward.1} parent=0 // pred_check_branch
    %15 = sbr.rel (0) target = $region5
  $region4: #{hydra_forward.1} parent=0 // pred_region
    _
  $region5: #{hydra_forward.1} parent=0 // pred_fallthru
    _
  // Predicated region
  $region6: #{hydra_forward.1} parent=0 // pred_check
    _
  $region7: #{hydra_forward.1} parent=0 // pred_check_branch
    %17 = sbr.rel (0) target = $region9
  $region8: #{hydra_forward.1} parent=0 // pred_region
    _
  $region9: #{hydra_forward.1} parent=0 // pred_fallthru
    _
  // Predicated region
  $region10: #{hydra_forward.1} parent=0 // pred_check
    _
  $region11: #{hydra_forward.1} parent=0 // pred_check_branch
    %19 = sbr.rel (0) target = $region13
  $region12: #{hydra_forward.1} parent=0 // pred_region
    _
  $region13: #{hydra_forward.1} parent=0 // pred_fallthru
    _
  // Predicated region
  $region14: #{hydra_forward.1} parent=0 // pred_check
    _
  $region15: #{hydra_forward.1} parent=0 // pred_check_branch
    %21 = sbr.rel (0) target = $region17
  $region16: #{hydra_forward.1} parent=0 // pred_region
    _
  $region17: #{hydra_forward.1} parent=0 // pred_fallthru
    _
  // Predicated region
  $region18: #{hydra_forward.1} parent=0 // pred_check
    _
  $region19: #{hydra_forward.1} parent=0 // pred_check_branch
    %23 = sbr.rel (0) target = $region21
  $region20: #{hydra_forward.1} parent=0 // pred_region
    _
  $region21: #{hydra_forward.1} parent=0 // pred_fallthru
    _
  // Predicated region
  $region22: #{hydra_forward.1} parent=0 // pred_check
    _
  $region23: #{hydra_forward.1} parent=0 // pred_check_branch
    %25 = sbr.rel (0) target = $region25
  $region24: #{hydra_forward.1} parent=0 // pred_region
    _
  $region25: #{hydra_forward.1} parent=0 // pred_fallthru
    _
  // Predicated region
  $region26: #{hydra_forward.1} parent=0 // pred_check
    _
  $region27: #{hydra_forward.1} parent=0 // pred_check_branch
    %27 = sbr.rel (0) target = $region29
  $region28: #{hydra_forward.1} parent=0 // pred_region
    _
  $region29: #{hydra_forward.1} parent=0 // pred_fallthru
    _
  // Predicated region
  $region30: #{hydra_forward.1} parent=0 // pred_check
    _
  $region31: #{hydra_forward.1} parent=0 // pred_check_branch
    %29 = sbr.rel (0) target = $region33
  $region32: #{hydra_forward.1} parent=0 // pred_region
    _
  $region33: #{hydra_forward.1} parent=0 // pred_fallthru
    _
  // Predicated region
  $region34: #{hydra_forward.1} parent=0 // pred_check
    _
  $region35: #{hydra_forward.1} parent=0 // pred_check_branch
    %31 = sbr.rel (0) target = $region37
  $region36: #{hydra_forward.1} parent=0 // pred_region
    _
  $region37: #{hydra_forward.1} parent=0 // pred_fallthru
    _
  %v32 = vld [vmem:[%s0] sm:$0xff]
  %v33 = vld [vmem:[%s2] sm:$0xff]
  %v34 = vld [vmem:[%s2 + $0x8] sm:$0xff]
  %v35 = vld [vmem:[%s3] sm:$0x1]
  %v37 = vlaneseq
  %v38 = vshrl.u32 %v37, 7
  %v39 = vsub.s32 0, %v38
  %v40 = vrot.slane %v35, %v39
  %vm42 = vcmask 130048
  %v44 = vsel %vm42, %v32, 0
  %46 = vmatprep.subr.mxu0 0.0
  %47 = vmatpush1.msra.mxu0 %v33
  %48 = vmatprep.subr.mxu0 0.0
  %49 = vmatpush1.msra.mxu0 %v34
  %50 = vmatprep.subr.mxu0 0.0
  %51 = vmatpush1.msra.mxu0 0.0
  %52 = vmatprep.subr.mxu0 0.0
  %53 = vmatpush1.msra.mxu0 0.0
  %54 = vmatprep.subr.mxu0 0.0
  %55 = vmatpush1.msra.mxu0 0.0
  %56 = vmatprep.subr.mxu0 0.0
  %57 = vmatpush1.msra.mxu0 0.0
  %58 = vmatprep.subr.mxu0 0.0
  %59 = vmatpush1.msra.mxu0 0.0
  %60 = vmatprep.subr.mxu0 0.0
  %61 = vmatpush1.msra.mxu0 0.0
  %62 = vmatprep.subr.mxu0 0.0
  %63 = vmatpush1.msra.mxu0 0.0
  %64 = vmatprep.subr.mxu0 0.0
  %65 = vmatpush1.msra.mxu0 0.0
  %66 = vmatprep.subr.mxu0 0.0
  %67 = vmatpush1.msra.mxu0 0.0
  %68 = vmatprep.subr.mxu0 0.0
  %69 = vmatpush1.msra.mxu0 0.0
  %70 = vmatprep.subr.mxu0 0.0
  %71 = vmatpush1.msra.mxu0 0.0
  %72 = vmatprep.subr.mxu0 0.0
  %73 = vmatpush1.msra.mxu0 0.0
  %74 = vmatprep.subr.mxu0 0.0
  %75 = vmatpush1.msra.mxu0 0.0
  %76 = vmatprep.subr.mxu0 0.0
  %77 = vmatpush1.msra.mxu0 0.0
  %78 = vmatprep.subr.mxu0 0.0
  %79 = vmatpush1.msra.mxu0 0.0
  %80 = vmatprep.subr.mxu0 0.0
  %81 = vmatpush1.msra.mxu0 0.0
  %82 = vmatprep.subr.mxu0 0.0
  %83 = vmatpush1.msra.mxu0 0.0
  %84 = vmatprep.subr.mxu0 0.0
  %85 = vmatpush1.msra.mxu0 0.0
  %86 = vmatprep.subr.mxu0 0.0
  %87 = vmatpush1.msra.mxu0 0.0
  %88 = vmatprep.subr.mxu0 0.0
  %89 = vmatpush1.msra.mxu0 0.0
  %90 = vmatprep.subr.mxu0 0.0
  %91 = vmatpush1.msra.mxu0 0.0
  %92 = vmatprep.subr.mxu0 0.0
  %93 = vmatpush1.msra.mxu0 0.0
  %94 = vmatprep.subr.mxu0 0.0
  %95 = vmatpush1.msra.mxu0 0.0
  %96 = vmatprep.subr.mxu0 0.0
  %97 = vmatpush1.msra.mxu0 0.0
  %98 = vmatprep.subr.mxu0 0.0
  %99 = vmatpush1.msra.mxu0 0.0
  %100 = vmatprep.subr.mxu0 0.0
  %101 = vmatpush1.msra.mxu0 0.0
  %102 = vmatprep.subr.mxu0 0.0
  %103 = vmatpush1.msra.mxu0 0.0
  %104 = vmatprep.subr.mxu0 0.0
  %105 = vmatpush1.msra.mxu0 0.0
  %106 = vmatprep.subr.mxu0 0.0
  %107 = vmatpush1.msra.mxu0 0.0
  %108 = vmatprep.subr.mxu0 0.0
  %109 = vmatpush1.msra.mxu0 0.0
  %110 = vmatprep.mubr.f32.mxu0 0.0
  %111 = vmatmul.mubr.f32.gmra.mrb[0].mxu0 %v44
  %v112 = vpop.f32.mrb[0].mxu0
  %v113 = vadd.f32 %v40, %v112
  %v114 = vpop.f32.mrb[0].mxu0
  %115 = vdwg.mxu0
  %v116 = vmax.f32 %v113, 0.0
  %v117 = vmul.f32 %v116, %v116
  %vm118 = vcmask 261120
  %v119 = vsel %vm118, %v117, 0.0
  %120 = vadd.xlane.f32.xlu0 %v119
  %v121 = vpop.xlane.xlu0 %120
  %v122 = vmax.f32 %v121, 1e-24
  %v123 = vrsqrt.pop %v122
  %v124 = vmul.f32 %v116, %v123
  %v125 = vld [vmem:[%s4] sm:$0xff]
  %v126 = vld [vmem:[%s4 + $0x8] sm:$0xff]
  %v127 = vld [vmem:[%s4 + $0x10] sm:$0xff]
  %v128 = vld [vmem:[%s4 + $0x18] sm:$0xff]
  %v129 = vld [vmem:[%s5] sm:$0x1]
  %v131 = vlaneseq
  %v132 = vshrl.u32 %v131, 7
  %v133 = vsub.s32 0, %v132
  %v134 = vrot.slane %v129, %v133
  %v137 = vsel %vm118, %v124, 0
  %139 = vmatprep.subr.mxu0 0.0
  %140 = vmatpush1.msra.mxu0 %v125
  %141 = vmatprep.subr.mxu0 0.0
  %142 = vmatpush1.msra.mxu0 %v126
  %143 = vmatprep.subr.mxu0 0.0
  %144 = vmatpush1.msra.mxu0 %v127
  %145 = vmatprep.subr.mxu0 0.0
  %146 = vmatpush1.msra.mxu0 %v128
  %147 = vmatprep.subr.mxu0 0.0
  %148 = vmatpush1.msra.mxu0 0.0
  %149 = vmatprep.subr.mxu0 0.0
  %150 = vmatpush1.msra.mxu0 0.0
  %151 = vmatprep.subr.mxu0 0.0
  %152 = vmatpush1.msra.mxu0 0.0
  %153 = vmatprep.subr.mxu0 0.0
  %154 = vmatpush1.msra.mxu0 0.0
  %155 = vmatprep.subr.mxu0 0.0
  %156 = vmatpush1.msra.mxu0 0.0
  %157 = vmatprep.subr.mxu0 0.0
  %158 = vmatpush1.msra.mxu0 0.0
  %159 = vmatprep.subr.mxu0 0.0
  %160 = vmatpush1.msra.mxu0 0.0
  %161 = vmatprep.subr.mxu0 0.0
  %162 = vmatpush1.msra.mxu0 0.0
  %163 = vmatprep.subr.mxu0 0.0
  %164 = vmatpush1.msra.mxu0 0.0
  %165 = vmatprep.subr.mxu0 0.0
  %166 = vmatpush1.msra.mxu0 0.0
  %167 = vmatprep.subr.mxu0 0.0
  %168 = vmatpush1.msra.mxu0 0.0
  %169 = vmatprep.subr.mxu0 0.0
  %170 = vmatpush1.msra.mxu0 0.0
  %171 = vmatprep.subr.mxu0 0.0
  %172 = vmatpush1.msra.mxu0 0.0
  %173 = vmatprep.subr.mxu0 0.0
  %174 = vmatpush1.msra.mxu0 0.0
  %175 = vmatprep.subr.mxu0 0.0
  %176 = vmatpush1.msra.mxu0 0.0
  %177 = vmatprep.subr.mxu0 0.0
  %178 = vmatpush1.msra.mxu0 0.0
  %179 = vmatprep.subr.mxu0 0.0
  %180 = vmatpush1.msra.mxu0 0.0
  %181 = vmatprep.subr.mxu0 0.0
  %182 = vmatpush1.msra.mxu0 0.0
  %183 = vmatprep.subr.mxu0 0.0
  %184 = vmatpush1.msra.mxu0 0.0
  %185 = vmatprep.subr.mxu0 0.0
  %186 = vmatpush1.msra.mxu0 0.0
  %187 = vmatprep.subr.mxu0 0.0
  %188 = vmatpush1.msra.mxu0 0.0
  %189 = vmatprep.subr.mxu0 0.0
  %190 = vmatpush1.msra.mxu0 0.0
  %191 = vmatprep.subr.mxu0 0.0
  %192 = vmatpush1.msra.mxu0 0.0
  %193 = vmatprep.subr.mxu0 0.0
  %194 = vmatpush1.msra.mxu0 0.0
  %195 = vmatprep.subr.mxu0 0.0
  %196 = vmatpush1.msra.mxu0 0.0
  %197 = vmatprep.subr.mxu0 0.0
  %198 = vmatpush1.msra.mxu0 0.0
  %199 = vmatprep.subr.mxu0 0.0
  %200 = vmatpush1.msra.mxu0 0.0
  %201 = vmatprep.subr.mxu0 0.0
  %202 = vmatpush1.msra.mxu0 0.0
  %203 = vmatprep.mubr.f32.mxu0 0.0
  %204 = vmatmul.mubr.f32.gmra.mrb[0].mxu0 %v137
  %v205 = vpop.f32.mrb[0].mxu0
  %v206 = vadd.f32 %v134, %v205
  %v207 = vpop.f32.mrb[0].mxu0
  %208 = vdwg.mxu0
  %v209 = vmax.f32 %v206, 0.0
  %v210 = vld [vmem:[%s6] sm:$0xff]
  %v211 = vld [vmem:[%s6 + $0x8] sm:$0xff]
  %v212 = vld [vmem:[%s6 + $0x10] sm:$0xff]
  %v213 = vld [vmem:[%s6 + $0x18] sm:$0xff]
  %v214 = vld [vmem:[%s7] sm:$0x1]
  %v216 = vlaneseq
  %v217 = vshrl.u32 %v216, 7
  %v218 = vsub.s32 0, %v217
  %v219 = vrot.slane %v214, %v218
  %v222 = vsel %vm118, %v209, 0
  %224 = vmatprep.subr.mxu0 0.0
  %225 = vmatpush1.msra.mxu0 %v210
  %226 = vmatprep.subr.mxu0 0.0
  %227 = vmatpush1.msra.mxu0 %v211
  %228 = vmatprep.subr.mxu0 0.0
  %229 = vmatpush1.msra.mxu0 %v212
  %230 = vmatprep.subr.mxu0 0.0
  %231 = vmatpush1.msra.mxu0 %v213
  %232 = vmatprep.subr.mxu0 0.0
  %233 = vmatpush1.msra.mxu0 0.0
  %234 = vmatprep.subr.mxu0 0.0
  %235 = vmatpush1.msra.mxu0 0.0
  %236 = vmatprep.subr.mxu0 0.0
  %237 = vmatpush1.msra.mxu0 0.0
  %238 = vmatprep.subr.mxu0 0.0
  %239 = vmatpush1.msra.mxu0 0.0
  %240 = vmatprep.subr.mxu0 0.0
  %241 = vmatpush1.msra.mxu0 0.0
  %242 = vmatprep.subr.mxu0 0.0
  %243 = vmatpush1.msra.mxu0 0.0
  %244 = vmatprep.subr.mxu0 0.0
  %245 = vmatpush1.msra.mxu0 0.0
  %246 = vmatprep.subr.mxu0 0.0
  %247 = vmatpush1.msra.mxu0 0.0
  %248 = vmatprep.subr.mxu0 0.0
  %249 = vmatpush1.msra.mxu0 0.0
  %250 = vmatprep.subr.mxu0 0.0
  %251 = vmatpush1.msra.mxu0 0.0
  %252 = vmatprep.subr.mxu0 0.0
  %253 = vmatpush1.msra.mxu0 0.0
  %254 = vmatprep.subr.mxu0 0.0
  %255 = vmatpush1.msra.mxu0 0.0
  %256 = vmatprep.subr.mxu0 0.0
  %257 = vmatpush1.msra.mxu0 0.0
  %258 = vmatprep.subr.mxu0 0.0
  %259 = vmatpush1.msra.mxu0 0.0
  %260 = vmatprep.subr.mxu0 0.0
  %261 = vmatpush1.msra.mxu0 0.0
  %262 = vmatprep.subr.mxu0 0.0
  %263 = vmatpush1.msra.mxu0 0.0
  %264 = vmatprep.subr.mxu0 0.0
  %265 = vmatpush1.msra.mxu0 0.0
  %266 = vmatprep.subr.mxu0 0.0
  %267 = vmatpush1.msra.mxu0 0.0
  %268 = vmatprep.subr.mxu0 0.0
  %269 = vmatpush1.msra.mxu0 0.0
  %270 = vmatprep.subr.mxu0 0.0
  %271 = vmatpush1.msra.mxu0 0.0
  %272 = vmatprep.subr.mxu0 0.0
  %273 = vmatpush1.msra.mxu0 0.0
  %274 = vmatprep.subr.mxu0 0.0
  %275 = vmatpush1.msra.mxu0 0.0
  %276 = vmatprep.subr.mxu0 0.0
  %277 = vmatpush1.msra.mxu0 0.0
  %278 = vmatprep.subr.mxu0 0.0
  %279 = vmatpush1.msra.mxu0 0.0
  %280 = vmatprep.subr.mxu0 0.0
  %281 = vmatpush1.msra.mxu0 0.0
  %282 = vmatprep.subr.mxu0 0.0
  %283 = vmatpush1.msra.mxu0 0.0
  %284 = vmatprep.subr.mxu0 0.0
  %285 = vmatpush1.msra.mxu0 0.0
  %286 = vmatprep.subr.mxu0 0.0
  %287 = vmatpush1.msra.mxu0 0.0
  %288 = vmatprep.mubr.f32.mxu0 0.0
  %289 = vmatmul.mubr.f32.gmra.mrb[0].mxu0 %v222
  %v290 = vpop.f32.mrb[0].mxu0
  %v291 = vadd.f32 %v219, %v290
  %v292 = vpop.f32.mrb[0].mxu0
  %293 = vdwg.mxu0
  %v294 = vmax.f32 %v291, 0.0
  %v295 = vmul.f32 %v294, %v294
  %297 = vrot.lane.b32.xlu0 %v295, 120
  %v298 = vpop.permute.xlu0 %297
  %vm300 = vcmask 31744
  %v301 = vsel %vm300, %v298, 0.0
  %302 = vadd.xlane.f32.xlu0 %v301
  %v303 = vpop.xlane.xlu0 %302
  %v304 = vmax.f32 %v303, 1e-24
  %v305 = vrsqrt.pop %v304
  %v306 = vmul.f32 %v294, %v305
  %v307 = vld [vmem:[%s1] sm:$0xff]
  %v308 = vlaneseq
  %v309 = vand.u32 %v308, 127
  %310 = vset.pattern.permute.xlu0 0
  %311 = vperm.xlu0 %310, %v307
  %v312 = vpop.permute.xlu0 %311
  %vm313 = vcmp.eq.s32.totalorder %v309, %v312
  %v314 = vsel %vm313, 1, 0
  %v315 = vcvt.s32.f32 %v314
  %v316 = vld [vmem:[%s8] sm:$0xff]
  %v317 = vld [vmem:[%s8 + $0x8] sm:$0xff]
  %v319 = vsel %vm42, %v315, 0
  %321 = vmatprep.subr.mxu0 0.0
  %322 = vmatpush1.msra.mxu0 %v316
  %323 = vmatprep.subr.mxu0 0.0
  %324 = vmatpush1.msra.mxu0 %v317
  %325 = vmatprep.subr.mxu0 0.0
  %326 = vmatpush1.msra.mxu0 0.0
  %327 = vmatprep.subr.mxu0 0.0
  %328 = vmatpush1.msra.mxu0 0.0
  %329 = vmatprep.subr.mxu0 0.0
  %330 = vmatpush1.msra.mxu0 0.0
  %331 = vmatprep.subr.mxu0 0.0
  %332 = vmatpush1.msra.mxu0 0.0
  %333 = vmatprep.subr.mxu0 0.0
  %334 = vmatpush1.msra.mxu0 0.0
  %335 = vmatprep.subr.mxu0 0.0
  %336 = vmatpush1.msra.mxu0 0.0
  %337 = vmatprep.subr.mxu0 0.0
  %338 = vmatpush1.msra.mxu0 0.0
  %339 = vmatprep.subr.mxu0 0.0
  %340 = vmatpush1.msra.mxu0 0.0
  %341 = vmatprep.subr.mxu0 0.0
  %342 = vmatpush1.msra.mxu0 0.0
  %343 = vmatprep.subr.mxu0 0.0
  %344 = vmatpush1.msra.mxu0 0.0
  %345 = vmatprep.subr.mxu0 0.0
  %346 = vmatpush1.msra.mxu0 0.0
  %347 = vmatprep.subr.mxu0 0.0
  %348 = vmatpush1.msra.mxu0 0.0
  %349 = vmatprep.subr.mxu0 0.0
  %350 = vmatpush1.msra.mxu0 0.0
  %351 = vmatprep.subr.mxu0 0.0
  %352 = vmatpush1.msra.mxu0 0.0
  %353 = vmatprep.subr.mxu0 0.0
  %354 = vmatpush1.msra.mxu0 0.0
  %355 = vmatprep.subr.mxu0 0.0
  %356 = vmatpush1.msra.mxu0 0.0
  %357 = vmatprep.subr.mxu0 0.0
  %358 = vmatpush1.msra.mxu0 0.0
  %359 = vmatprep.subr.mxu0 0.0
  %360 = vmatpush1.msra.mxu0 0.0
  %361 = vmatprep.subr.mxu0 0.0
  %362 = vmatpush1.msra.mxu0 0.0
  %363 = vmatprep.subr.mxu0 0.0
  %364 = vmatpush1.msra.mxu0 0.0
  %365 = vmatprep.subr.mxu0 0.0
  %366 = vmatpush1.msra.mxu0 0.0
  %367 = vmatprep.subr.mxu0 0.0
  %368 = vmatpush1.msra.mxu0 0.0
  %369 = vmatprep.subr.mxu0 0.0
  %370 = vmatpush1.msra.mxu0 0.0
  %371 = vmatprep.subr.mxu0 0.0
  %372 = vmatpush1.msra.mxu0 0.0
  %373 = vmatprep.subr.mxu0 0.0
  %374 = vmatpush1.msra.mxu0 0.0
  %375 = vmatprep.subr.mxu0 0.0
  %376 = vmatpush1.msra.mxu0 0.0
  %377 = vmatprep.subr.mxu0 0.0
  %378 = vmatpush1.msra.mxu0 0.0
  %379 = vmatprep.subr.mxu0 0.0
  %380 = vmatpush1.msra.mxu0 0.0
  %381 = vmatprep.subr.mxu0 0.0
  %382 = vmatpush1.msra.mxu0 0.0
  %383 = vmatprep.subr.mxu0 0.0
  %384 = vmatpush1.msra.mxu0 0.0
  %385 = vmatprep.mubr.f32.mxu0 0.0
  %386 = vmatmul.mubr.f32.gmra.mrb[0].mxu0 %v319
  %v387 = vpop.f32.mrb[0].mxu0
  %v388 = vadd.f32 0.0, %v387
  %v389 = vpop.f32.mrb[0].mxu0
  %390 = vdwg.mxu0
  %v391 = vmul.f32 %v388, %v388
  %v392 = vsel %vm118, %v391, 0.0
  %393 = vadd.xlane.f32.xlu0 %v392
  %v394 = vpop.xlane.xlu0 %393
  %v395 = vmax.f32 %v394, 1e-24
  %v396 = vrsqrt.pop %v395
  %v397 = vmul.f32 %v388, %v396
  %398 = vst.msk [vmem:[%s9] sm:$0xff] %vm118, %v124
  %399 = vrot.lane.b32.xlu0 %v209, 32
  %v400 = vpop.permute.xlu0 %399
  %vm402 = vcmask 523520
  %403 = vst.msk [vmem:[%s9] sm:$0xff] %vm402, %v400
  %405 = vrot.lane.b32.xlu0 %v294, 64
  %v406 = vpop.permute.xlu0 %405
  %vm408 = vcmask 589312
  %409 = vst.msk [vmem:[%s9] sm:$0xff] %vm408, %v406
  %411 = vrot.lane.b32.xlu0 %v306, 64
  %v412 = vpop.permute.xlu0 %411
  %vm414 = vcmask 622144
  %415 = vst.msk [vmem:[%s9] sm:$0xff] %vm414, %v412
  %417 = vrot.lane.b32.xlu0 %v397, 76
  %v418 = vpop.permute.xlu0 %417
  %vm420 = vcmask 884320
  %421 = vst.msk [vmem:[%s9] sm:$0xff] %vm420, %v418
  %vm422 = vcmask 1048416
  %423 = vst.msk [vmem:[%s9] sm:$0xff] %vm422, 0.0
  // Predicated region
  $region38: #{hydra_forward.1} parent=0 // pred_check
    _
  $region39: #{hydra_forward.1} parent=0 // pred_check_branch
    %425 = sbr.rel (0) target = $region41
  $region40: #{hydra_forward.1} parent=0 // pred_region
    _
  $region41: #{hydra_forward.1} parent=0 // pred_fallthru
    _
  // Predicated region
  $region42: #{hydra_forward.1} parent=0 // pred_check
    _
  $region43: #{hydra_forward.1} parent=0 // pred_check_branch
    %427 = sbr.rel (0) target = $region45
  $region44: #{hydra_forward.1} parent=0 // pred_region
    _
  $region45: #{hydra_forward.1} parent=0 // pred_fallthru
    _

</llo_original>
